<compile_context>
chip_gen: v7x
topology: tpu7x:2x2x1
jax: 0.10.0
libtpu: 0.0.40
codegen_flags: <defaults>
</compile_context>

<pallas_src>
import functools

import jax
import jax.numpy as jnp
from jax.experimental import pallas as pl
from jax.experimental.pallas import tpu as pltpu

H1 = 64          # fc1 out features
H2 = 32          # fc2 out features
LANE = 128       # TPU lane width; hidden/output feature dims padded to this


def _round_up(x, m):
    return ((x + m - 1) // m) * m


def mlp_kernel(x_ref, w1_ref, w2_ref, w3_ref, b_ref, o_ref):
    """One (tile_m, input_size) row-tile of the fused 3-layer MLP.

    x_ref:  (tile_m, D)   input rows (f32), D = input_size (natural width)
    w1_ref: (D, 128)      bf16 fc1 weight, zero-padded in the out dim
    w2_ref: (128, 128)    bf16 fc2 weight, zero-padded
    w3_ref: (128, 128)    bf16 fc3 weight, zero-padded
    b_ref:  (8, 128)      f32; row 0 = b1, row 1 = b2, row 2 = b3 (zero-padded)
    o_ref:  (tile_m, 128) bf16 logits slab; real logits in columns [0, class_size)
    """
    x = x_ref[...].astype(jnp.bfloat16)          # bf16 MXU operands, f32 accumulate

    # fc1 + tanh
    h1 = jnp.tanh(
        jnp.dot(x, w1_ref[...], preferred_element_type=jnp.float32) + b_ref[0:1, :])
    # fc2 + tanh
    h2 = jnp.tanh(
        jnp.dot(h1.astype(jnp.bfloat16), w2_ref[...],
                preferred_element_type=jnp.float32) + b_ref[1:2, :])
    # fc3 (no activation)
    out = jnp.dot(h2.astype(jnp.bfloat16), w3_ref[...],
                  preferred_element_type=jnp.float32) + b_ref[2:3, :]
    o_ref[...] = out.astype(o_ref.dtype)


def init_params(key, input_size, class_size=7):
    """torch.nn.Linear-style uniform init; weights stored (in, out), bias (out,)."""
    ks = jax.random.split(key, 6)

    def lin(kw, kb, fan_in, fan_out):
        bound = 1.0 / jnp.sqrt(fan_in)
        w = jax.random.uniform(kw, (fan_in, fan_out), jnp.float32, -bound, bound)
        b = jax.random.uniform(kb, (fan_out,), jnp.float32, -bound, bound)
        return w, b

    w1, b1 = lin(ks[0], ks[1], input_size, H1)
    w2, b2 = lin(ks[2], ks[3], H1, H2)
    w3, b3 = lin(ks[4], ks[5], H2, class_size)
    return (w1, b1, w2, b2, w3, b3)


def pack_params(params, input_size, class_size):
    """One-time packing: bf16 lane-dense weights + one f32 (8,128) bias block."""
    w1, b1, w2, b2, w3, b3 = params

    w1p = jnp.zeros((input_size, LANE), jnp.bfloat16)
    w1p = w1p.at[:, :H1].set(w1.astype(jnp.bfloat16))

    w2p = jnp.zeros((LANE, LANE), jnp.bfloat16)
    w2p = w2p.at[:H1, :H2].set(w2.astype(jnp.bfloat16))

    w3p = jnp.zeros((LANE, LANE), jnp.bfloat16)
    w3p = w3p.at[:H2, :class_size].set(w3.astype(jnp.bfloat16))

    bias = jnp.zeros((8, LANE), jnp.float32)
    bias = bias.at[0, :H1].set(b1)
    bias = bias.at[1, :H2].set(b2)
    bias = bias.at[2, :class_size].set(b3)
    return w1p, w2p, w3p, bias


def _pick_tile_m(batch, input_size, tile_m):
    """Clamp tile_m to the batch and to a ~24 MiB VMEM budget (safe on v5e/v6e/v7x)."""
    tm = max(8, _round_up(min(tile_m, _round_up(batch, 8)), 8))

    def vmem_bytes(t):
        return (2 * t * input_size * 4                      # x tiles (f32), double-buffered
                + 2 * t * LANE * 2                          # out tiles (bf16), double-buffered
                + 2 * (input_size * LANE + 2 * LANE * LANE) * 2   # bf16 weights
                + 2 * 8 * LANE * 4)                         # bias block

    budget = 24 * 1024 * 1024
    while tm > 8 and vmem_bytes(tm) > budget:
        tm = max(8, _round_up(tm // 2, 8))
    return tm


@functools.partial(jax.jit, static_argnames=("input_size", "class_size", "tile_m"))
def mlp_apply_batched(x, packed, *, input_size, class_size, tile_m=512):
    """Batched MLP: x is (B, input_size) -> (B, class_size) float32 logits."""
    w1p, w2p, w3p, bias = packed
    b = x.shape[0]
    assert x.shape[1] == input_size

    tm = _pick_tile_m(b, input_size, tile_m)
    b_pad = _round_up(b, tm)

    x_in = x.astype(jnp.float32)
    if b_pad != b:
        # Row-only padding (feature dim stays at its natural width).
        x_in = jnp.pad(x_in, ((0, b_pad - b), (0, 0)))

    out = pl.pallas_call(
        mlp_kernel,
        out_shape=jax.ShapeDtypeStruct((b_pad, LANE), jnp.bfloat16),
        grid=(b_pad // tm,),
        in_specs=[
            pl.BlockSpec((tm, input_size), lambda i: (i, 0)),
            # Constant index_maps: weights/biases stay VMEM-resident across grid steps.
            pl.BlockSpec((input_size, LANE), lambda i: (0, 0)),
            pl.BlockSpec((LANE, LANE), lambda i: (0, 0)),
            pl.BlockSpec((LANE, LANE), lambda i: (0, 0)),
            pl.BlockSpec((8, LANE), lambda i: (0, 0)),
        ],
        out_specs=pl.BlockSpec((tm, LANE), lambda i: (i, 0)),
        compiler_params=pltpu.CompilerParams(
            # TODO(synk): on v7x, experiment with pltpu.CORE_PARALLEL on this axis.
            dimension_semantics=("parallel",),
            vmem_limit_bytes=32 * 1024 * 1024,
        ),
    )(x_in, w1p, w2p, w3p, bias)

    return out[:b, :class_size].astype(jnp.float32)


def mlp_forward(embedding, packed, *, input_size, class_size):
    """Matches MLP.forward: out = embedding.view(1, -1); tanh(fc1)->tanh(fc2)->fc3."""
    x = embedding.reshape(1, -1)
    return mlp_apply_batched(x, packed, input_size=input_size,
                             class_size=class_size, tile_m=128)


if __name__ == "__main__":
    key = jax.random.PRNGKey(0)
    k_emb, k_par, k_batch = jax.random.split(key, 3)

    input_size = 32
    class_size = 7

    # embedding of shape (4, 8) -> view(1, -1) -> (1, 32)
    embedding = jax.random.normal(k_emb, (4, 8), jnp.float32)

    params = init_params(k_par, input_size, class_size)
    packed = pack_params(params, input_size, class_size)   # packed once, reused

    # 1) module-equivalent single-sample forward
    out1 = jax.block_until_ready(
        mlp_forward(embedding, packed, input_size=input_size, class_size=class_size))

    # 2) batched path (exercises batch-row padding and a multi-step parallel grid)
    xb = jax.random.normal(k_batch, (300, input_size), jnp.float32)
    outb = jax.block_until_ready(
        mlp_apply_batched(xb, packed, input_size=input_size,
                          class_size=class_size, tile_m=512))

    # pure-JAX fp32 reference (intended semantics: tanh(fc1) -> tanh(fc2) -> fc3)
    w1, b1, w2, b2, w3, b3 = params
    hi = jax.lax.Precision.HIGHEST

    def ref_fn(x):
        h = jnp.tanh(jnp.dot(x, w1, precision=hi) + b1)
        h = jnp.tanh(jnp.dot(h, w2, precision=hi) + b2)
        return jnp.dot(h, w3, precision=hi) + b3

    ref1 = ref_fn(embedding.reshape(1, -1))
    refb = ref_fn(xb)

    assert out1.shape == (1, class_size)
    assert outb.shape == (300, class_size)
    # bf16 operands + bf16 output slab => compare with a correspondingly loose tol.
    assert jnp.allclose(out1, ref1, atol=2e-2, rtol=2e-2)
    assert jnp.allclose(outb, refb, atol=2e-2, rtol=2e-2)

    print("KERNEL_OK")
</pallas_src>

<mosaic_0001>
module attributes {stable_mosaic.version = 11 : i64} {
  func.func @mlp_kernel(%arg0: i32, %arg1: memref<8x32xf32, #tpu.memory_space<vmem>>, %arg2: memref<32x128xbf16, #tpu.memory_space<vmem>>, %arg3: memref<128x128xbf16, #tpu.memory_space<vmem>>, %arg4: memref<128x128xbf16, #tpu.memory_space<vmem>>, %arg5: memref<8x128xf32, #tpu.memory_space<vmem>>, %arg6: memref<8x128xbf16, #tpu.memory_space<vmem>>) attributes {dimension_semantics = [#tpu.dimension_semantics<parallel>], iteration_bounds = array<i64: 1>, scalar_prefetch = 0 : i64, scratch_operands = 0 : i64, tpu.core_type = #tpu.core_type<tc>, window_params = [{transform_indices = @transform_0, window_bounds = array<i64: 8, 32>}, {pipeline_mode = #tpu.pipeline_mode<synchronous>, transform_indices = @transform_1, window_bounds = array<i64: 32, 128>}, {pipeline_mode = #tpu.pipeline_mode<synchronous>, transform_indices = @transform_2, window_bounds = array<i64: 128, 128>}, {pipeline_mode = #tpu.pipeline_mode<synchronous>, transform_indices = @transform_3, window_bounds = array<i64: 128, 128>}, {pipeline_mode = #tpu.pipeline_mode<synchronous>, transform_indices = @transform_4, window_bounds = array<i64: 8, 128>}, {transform_indices = @transform_5, window_bounds = array<i64: 8, 128>}]} {
    %c0 = arith.constant 0 : index
    %c0_0 = arith.constant 0 : index
    %0 = vector.load %arg1[%c0, %c0_0] : memref<8x32xf32, #tpu.memory_space<vmem>>, vector<8x32xf32>
    %1 = arith.truncf %0 : vector<8x32xf32> to vector<8x32xbf16>
    %c0_1 = arith.constant 0 : index
    %c0_2 = arith.constant 0 : index
    %2 = vector.load %arg2[%c0_1, %c0_2] : memref<32x128xbf16, #tpu.memory_space<vmem>>, vector<32x128xbf16>
    %cst = arith.constant dense<0.000000e+00> : vector<8x128xf32>
    %3 = tpu.matmul %1, %2, %cst {dimension_numbers = #tpu.dot_dimension_numbers<[1], [0], [0], [1], [0, 0, 1, 1], [], []>} : vector<8x32xbf16>, vector<32x128xbf16>, vector<8x128xf32> -> vector<8x128xf32>
    %c0_3 = arith.constant 0 : index
    %c0_4 = arith.constant 0 : index
    %4 = vector.load %arg5[%c0_3, %c0_4] : memref<8x128xf32, #tpu.memory_space<vmem>>, vector<1x128xf32>
    %5 = vector.broadcast %4 : vector<1x128xf32> to vector<8x128xf32>
    %6 = arith.addf %3, %5 : vector<8x128xf32>
    %7 = math.tanh %6 : vector<8x128xf32>
    %8 = arith.truncf %7 : vector<8x128xf32> to vector<8x128xbf16>
    %c0_5 = arith.constant 0 : index
    %c0_6 = arith.constant 0 : index
    %9 = vector.load %arg3[%c0_5, %c0_6] : memref<128x128xbf16, #tpu.memory_space<vmem>>, vector<128x128xbf16>
    %cst_7 = arith.constant dense<0.000000e+00> : vector<8x128xf32>
    %10 = tpu.matmul %8, %9, %cst_7 {dimension_numbers = #tpu.dot_dimension_numbers<[1], [0], [0], [1], [0, 0, 1, 1], [], []>} : vector<8x128xbf16>, vector<128x128xbf16>, vector<8x128xf32> -> vector<8x128xf32>
    %c1 = arith.constant 1 : index
    %c0_8 = arith.constant 0 : index
    %11 = vector.load %arg5[%c1, %c0_8] : memref<8x128xf32, #tpu.memory_space<vmem>>, vector<1x128xf32>
    %12 = vector.broadcast %11 : vector<1x128xf32> to vector<8x128xf32>
    %13 = arith.addf %10, %12 : vector<8x128xf32>
    %14 = math.tanh %13 : vector<8x128xf32>
    %15 = arith.truncf %14 : vector<8x128xf32> to vector<8x128xbf16>
    %c0_9 = arith.constant 0 : index
    %c0_10 = arith.constant 0 : index
    %16 = vector.load %arg4[%c0_9, %c0_10] : memref<128x128xbf16, #tpu.memory_space<vmem>>, vector<128x128xbf16>
    %cst_11 = arith.constant dense<0.000000e+00> : vector<8x128xf32>
    %17 = tpu.matmul %15, %16, %cst_11 {dimension_numbers = #tpu.dot_dimension_numbers<[1], [0], [0], [1], [0, 0, 1, 1], [], []>} : vector<8x128xbf16>, vector<128x128xbf16>, vector<8x128xf32> -> vector<8x128xf32>
    %c2 = arith.constant 2 : index
    %c0_12 = arith.constant 0 : index
    %18 = vector.load %arg5[%c2, %c0_12] : memref<8x128xf32, #tpu.memory_space<vmem>>, vector<1x128xf32>
    %19 = vector.broadcast %18 : vector<1x128xf32> to vector<8x128xf32>
    %20 = arith.addf %17, %19 : vector<8x128xf32>
    %21 = arith.truncf %20 : vector<8x128xf32> to vector<8x128xbf16>
    %c0_13 = arith.constant 0 : index
    %c0_14 = arith.constant 0 : index
    %22 = vector.load %arg6[%c0_13, %c0_14] : memref<8x128xbf16, #tpu.memory_space<vmem>>, vector<8x128xbf16>
    tpu.vector_store %arg6[%c0_13, %c0_14], %21 {strides = array<i32>} : memref<8x128xbf16, #tpu.memory_space<vmem>>, vector<8x128xbf16>,
    return
  }
  func.func @transform_0(%arg0: i32) -> (i32, i32) {
    %c0_i32 = arith.constant 0 : i32
    %c0_i32_0 = arith.constant 0 : i32
    return %arg0, %c0_i32 : i32, i32
  }
  func.func @transform_1(%arg0: i32) -> (i32, i32) {
    %c0_i32 = arith.constant 0 : i32
    %c0_i32_0 = arith.constant 0 : i32
    %c0_i32_1 = arith.constant 0 : i32
    return %c0_i32, %c0_i32_0 : i32, i32
  }
  func.func @transform_2(%arg0: i32) -> (i32, i32) {
    %c0_i32 = arith.constant 0 : i32
    %c0_i32_0 = arith.constant 0 : i32
    %c0_i32_1 = arith.constant 0 : i32
    return %c0_i32, %c0_i32_0 : i32, i32
  }
  func.func @transform_3(%arg0: i32) -> (i32, i32) {
    %c0_i32 = arith.constant 0 : i32
    %c0_i32_0 = arith.constant 0 : i32
    %c0_i32_1 = arith.constant 0 : i32
    return %c0_i32, %c0_i32_0 : i32, i32
  }
  func.func @transform_4(%arg0: i32) -> (i32, i32) {
    %c0_i32 = arith.constant 0 : i32
    %c0_i32_0 = arith.constant 0 : i32
    %c0_i32_1 = arith.constant 0 : i32
    return %c0_i32, %c0_i32_0 : i32, i32
  }
  func.func @transform_5(%arg0: i32) -> (i32, i32) {
    %c0_i32 = arith.constant 0 : i32
    %c0_i32_0 = arith.constant 0 : i32
    return %arg0, %c0_i32 : i32, i32
  }
}

</mosaic_0001>

<llo_original>
// kernel: mlp_apply_batched.1
$region0: #{mlp_apply_batched.1}
  #allocation0 [shape = 'u32[]', space=smem, size = 0x4, offset = 0x4, fixed_abs, tag = 'smem constant byte address 0x4 - core index']
  #allocation1 [shape = 'u32[144,128]{1,0:T(1,128)}', space=vmem, size = 0x12000, scoped, tag = 'internal scratch']
  %s0 = inlined_call_operand.vmem [shape: f32[8,32], index: 0, kind: input, shape index: {}]
  %s1 = inlined_call_operand.hbm [shape: bf16[32,128], index: 1, kind: input, shape index: {}]
  %s2 = inlined_call_operand.hbm [shape: bf16[128,128], index: 2, kind: input, shape index: {}]
  %s3 = inlined_call_operand.hbm [shape: bf16[128,128], index: 3, kind: input, shape index: {}]
  %s4 = inlined_call_operand.vmem [shape: f32[8,128], index: 4, kind: input, shape index: {}]
  %s5 = inlined_call_operand.vmem [shape: bf16[8,128], index: 5, kind: output, shape index: {}]
  %s6 = sld [smem:[#allocation0]]
  $region42: #{mlp_apply_batched.1} parent=0
    _
  %s8 = ssub.s32 1, %s6
  %s9 = scalar_select 0, %s8, %s6
  $region1: #{mlp_apply_batched.1} parent=0
    #allocation2 [shape = 'u8[8192]{0}', space=vmem, size = 0x2000, scoped, tag = 'input window, operand 1, single buffered']
    #allocation3 [shape = 's32[1]{0}', space=sflag, size = 0x4, scoped, tag = 'scoped memory for mlp_apply_batched.1']
    #allocation4 [shape = 'u8[32768]{0}', space=vmem, size = 0x8000, scoped, tag = 'input window, operand 2, single buffered']
    #allocation5 [shape = 's32[1]{0}', space=sflag, size = 0x4, scoped, tag = 'scoped memory for mlp_apply_batched.1']
    #allocation6 [shape = 'u8[32768]{0}', space=vmem, size = 0x8000, scoped, tag = 'input window, operand 3, single buffered']
    %10 = vsyncpa [#allocation3], 0
    %11 = vsyncpa [#allocation5], 0
    // Predicated region
    $region2: #{mlp_apply_batched.1} parent=1 // pred_check
      _
    $region3: #{mlp_apply_batched.1} parent=1 // pred_check_branch
      %13 = sbr.rel (0) target = $region5
    $region4: #{mlp_apply_batched.1} parent=1 // pred_region
      _
    $region5: #{mlp_apply_batched.1} parent=1 // pred_fallthru
      _
    // Predicated region
    $region6: #{mlp_apply_batched.1} parent=1 // pred_check
      _
    $region7: #{mlp_apply_batched.1} parent=1 // pred_check_branch
      %15 = sbr.rel (0) target = $region9
    $region8: #{mlp_apply_batched.1} parent=1 // pred_region
      %s17 = ssub.s32 256, 256
      %18 = vsyncadd [#allocation3], %s17
      %s19 = sshll.u32 [#allocation2], 4
      %s20 = int_to_ptr.vmem [resolvable:$true] %s19
      %25 = dma.hbm_to_vmem [thread:$0]  %s1, 256, %s20, [#allocation3], 64, 64, 4
    $region9: #{mlp_apply_batched.1} parent=1 // pred_fallthru
      _
    // Predicated region
    $region10: #{mlp_apply_batched.1} parent=1 // pred_check
      _
    $region11: #{mlp_apply_batched.1} parent=1 // pred_check_branch
      %27 = sbr.rel (0) target = $region13
    $region12: #{mlp_apply_batched.1} parent=1 // pred_region
      %s29 = ssub.s32 1024, 1024
      %30 = vsyncadd [#allocation5], %s29
      %s31 = sshll.u32 [#allocation4], 4
      %s32 = int_to_ptr.vmem [resolvable:$true] %s31
      %37 = dma.hbm_to_vmem [thread:$0]  %s2, 1024, %s32, [#allocation5], 64, 64, 4
    $region13: #{mlp_apply_batched.1} parent=1 // pred_fallthru
      _
    // Predicated region
    $region14: #{mlp_apply_batched.1} parent=1 // pred_check
      _
    $region15: #{mlp_apply_batched.1} parent=1 // pred_check_branch
      %39 = sbr.rel (0) target = $region17
    $region16: #{mlp_apply_batched.1} parent=1 // pred_region
      %s41 = ssub.s32 1024, 1024
      %42 = vsyncadd [#allocation5], %s41
      %s43 = sshll.u32 [#allocation6], 4
      %s44 = int_to_ptr.vmem [resolvable:$true] %s43
      %49 = dma.hbm_to_vmem [thread:$0]  %s3, 1024, %s44, [#allocation5], 64, 64, 4
    $region17: #{mlp_apply_batched.1} parent=1 // pred_fallthru
      _
    // Predicated region
    $region18: #{mlp_apply_batched.1} parent=1 // pred_check
      _
    $region19: #{mlp_apply_batched.1} parent=1 // pred_check_branch
      %51 = sbr.rel (0) target = $region21
    $region20: #{mlp_apply_batched.1} parent=1 // pred_region
      _
    $region21: #{mlp_apply_batched.1} parent=1 // pred_fallthru
      _
    // Predicated region
    $region22: #{mlp_apply_batched.1} parent=1 // pred_check
      _
    $region23: #{mlp_apply_batched.1} parent=1 // pred_check_branch
      %53 = sbr.rel (0) target = $region25
    $region24: #{mlp_apply_batched.1} parent=1 // pred_region
      %54 = dma.done [#allocation3], 256
    $region25: #{mlp_apply_batched.1} parent=1 // pred_fallthru
      _
    // Predicated region
    $region26: #{mlp_apply_batched.1} parent=1 // pred_check
      _
    $region27: #{mlp_apply_batched.1} parent=1 // pred_check_branch
      %56 = sbr.rel (0) target = $region29
    $region28: #{mlp_apply_batched.1} parent=1 // pred_region
      %57 = dma.done [#allocation5], 1024
    $region29: #{mlp_apply_batched.1} parent=1 // pred_fallthru
      _
    // Predicated region
    $region30: #{mlp_apply_batched.1} parent=1 // pred_check
      _
    $region31: #{mlp_apply_batched.1} parent=1 // pred_check_branch
      %59 = sbr.rel (0) target = $region33
    $region32: #{mlp_apply_batched.1} parent=1 // pred_region
      %60 = dma.done [#allocation5], 1024
    $region33: #{mlp_apply_batched.1} parent=1 // pred_fallthru
      _
    %v62 = vld [vmem:[%s0] sm:$0xff]
    %v63 = vpack.c.bf16 %v62, %v62
    %v64 = vld [vmem:[#allocation2] sm:$0xf]
    %v65 = vld [vmem:[#allocation2 + $0x4] sm:$0xf]
    %v66 = vld [vmem:[#allocation2 + $0x8] sm:$0xf]
    %v67 = vld [vmem:[#allocation2 + $0xc] sm:$0xf]
    %v68 = vld [vmem:[%s4] sm:$0x1]
    %v69 = vlaneseq
    %v70 = vshrl.u32 %v69, 7
    %v71 = vsub.s32 0, %v70
    %v72 = vrot.slane %v68, %v71
    %v77 = vunpack.c.l.b16 %v64
    %v78 = vunpack.c.l.b16 %v65
    %v79 = vunpack.c.l.b16 %v66
    %v80 = vunpack.c.l.b16 %v67
    %v81 = vpack.c.b16 %v78, %v77
    %v82 = vpack.c.b16 %v80, %v79
    %vm85 = vcmask 261120
    %v87 = vsel %vm85, %v63, 0
    %89 = vmatprep.subr.bf16.mxu0 0
    %90 = vmatpush1.bf16.msra.mxu0 %v81
    %91 = vmatprep.subr.bf16.mxu0 0
    %92 = vmatpush1.bf16.msra.mxu0 %v82
    %93 = vmatprep.subr.bf16.mxu0 0
    %94 = vmatpush1.bf16.msra.mxu0 0
    %95 = vmatprep.subr.bf16.mxu0 0
    %96 = vmatpush1.bf16.msra.mxu0 0
    %97 = vmatprep.subr.bf16.mxu0 0
    %98 = vmatpush1.bf16.msra.mxu0 0
    %99 = vmatprep.subr.bf16.mxu0 0
    %100 = vmatpush1.bf16.msra.mxu0 0
    %101 = vmatprep.subr.bf16.mxu0 0
    %102 = vmatpush1.bf16.msra.mxu0 0
    %103 = vmatprep.subr.bf16.mxu0 0
    %104 = vmatpush1.bf16.msra.mxu0 0
    %105 = vmatprep.subr.bf16.mxu0 0
    %106 = vmatpush1.bf16.msra.mxu0 0
    %107 = vmatprep.subr.bf16.mxu0 0
    %108 = vmatpush1.bf16.msra.mxu0 0
    %109 = vmatprep.subr.bf16.mxu0 0
    %110 = vmatpush1.bf16.msra.mxu0 0
    %111 = vmatprep.subr.bf16.mxu0 0
    %112 = vmatpush1.bf16.msra.mxu0 0
    %113 = vmatprep.subr.bf16.mxu0 0
    %114 = vmatpush1.bf16.msra.mxu0 0
    %115 = vmatprep.subr.bf16.mxu0 0
    %116 = vmatpush1.bf16.msra.mxu0 0
    %117 = vmatprep.subr.bf16.mxu0 0
    %118 = vmatpush1.bf16.msra.mxu0 0
    %119 = vmatprep.subr.bf16.mxu0 0
    %120 = vmatpush1.bf16.msra.mxu0 0
    %121 = vmatprep.mubr.bf16.mxu0 0
    %122 = vmatmul.mubr.bf16.gmra.mrb[0].mxu0 %v87
    %v123 = vpop.f32.mrb[0].mxu0
    %v124 = vadd.f32 %v72, %v123
    %v125 = vpop.f32.mrb[0].mxu0
    %v126 = vpop.f32.mrb[0].mxu0
    %v127 = vpop.f32.mrb[0].mxu0
    %128 = vdwg.mxu0
    %v129 = vtanh.pop %v124
    %v130 = vpack.c.bf16 %v129, %v129
    %v131 = vld [vmem:[#allocation4] sm:$0xf]
    %v132 = vld [vmem:[#allocation4 + $0x4] sm:$0xf]
    %v133 = vld [vmem:[#allocation4 + $0x8] sm:$0xf]
    %v134 = vld [vmem:[#allocation4 + $0xc] sm:$0xf]
    %v135 = vld [vmem:[#allocation4 + $0x10] sm:$0xf]
    %v136 = vld [vmem:[#allocation4 + $0x14] sm:$0xf]
    %v137 = vld [vmem:[#allocation4 + $0x18] sm:$0xf]
    %v138 = vld [vmem:[#allocation4 + $0x1c] sm:$0xf]
    %v139 = vld [vmem:[#allocation4 + $0x20] sm:$0xf]
    %v140 = vld [vmem:[#allocation4 + $0x24] sm:$0xf]
    %v141 = vld [vmem:[#allocation4 + $0x28] sm:$0xf]
    %v142 = vld [vmem:[#allocation4 + $0x2c] sm:$0xf]
    %v143 = vld [vmem:[#allocation4 + $0x30] sm:$0xf]
    %v144 = vld [vmem:[#allocation4 + $0x34] sm:$0xf]
    %v145 = vld [vmem:[#allocation4 + $0x38] sm:$0xf]
    %v146 = vld [vmem:[#allocation4 + $0x3c] sm:$0xf]
    %v147 = vld [vmem:[%s4 + $0x1] sm:$0x1]
    %v148 = vlaneseq
    %v149 = vshrl.u32 %v148, 7
    %v150 = vsub.s32 0, %v149
    %v151 = vrot.slane %v147, %v150
    %v168 = vunpack.c.l.b16 %v131
    %v169 = vunpack.c.l.b16 %v132
    %v170 = vunpack.c.l.b16 %v133
    %v171 = vunpack.c.l.b16 %v134
    %v172 = vunpack.c.l.b16 %v135
    %v173 = vunpack.c.l.b16 %v136
    %v174 = vunpack.c.l.b16 %v137
    %v175 = vunpack.c.l.b16 %v138
    %v176 = vunpack.c.l.b16 %v139
    %v177 = vunpack.c.l.b16 %v140
    %v178 = vunpack.c.l.b16 %v141
    %v179 = vunpack.c.l.b16 %v142
    %v180 = vunpack.c.l.b16 %v143
    %v181 = vunpack.c.l.b16 %v144
    %v182 = vunpack.c.l.b16 %v145
    %v183 = vunpack.c.l.b16 %v146
    %v184 = vpack.c.b16 %v169, %v168
    %v185 = vpack.c.b16 %v171, %v170
    %v186 = vpack.c.b16 %v173, %v172
    %v187 = vpack.c.b16 %v175, %v174
    %v188 = vpack.c.b16 %v177, %v176
    %v189 = vpack.c.b16 %v179, %v178
    %v190 = vpack.c.b16 %v181, %v180
    %v191 = vpack.c.b16 %v183, %v182
    %200 = vmatprep.subr.bf16.mxu0 0
    %201 = vmatpush1.bf16.msra.mxu0 %v184
    %202 = vmatprep.subr.bf16.mxu0 0
    %203 = vmatpush1.bf16.msra.mxu0 %v185
    %204 = vmatprep.subr.bf16.mxu0 0
    %205 = vmatpush1.bf16.msra.mxu0 %v186
    %206 = vmatprep.subr.bf16.mxu0 0
    %207 = vmatpush1.bf16.msra.mxu0 %v187
    %208 = vmatprep.subr.bf16.mxu0 0
    %209 = vmatpush1.bf16.msra.mxu0 %v188
    %210 = vmatprep.subr.bf16.mxu0 0
    %211 = vmatpush1.bf16.msra.mxu0 %v189
    %212 = vmatprep.subr.bf16.mxu0 0
    %213 = vmatpush1.bf16.msra.mxu0 %v190
    %214 = vmatprep.subr.bf16.mxu0 0
    %215 = vmatpush1.bf16.msra.mxu0 %v191
    %216 = vmatprep.subr.bf16.mxu0 0
    %217 = vmatpush1.bf16.msra.mxu0 0
    %218 = vmatprep.subr.bf16.mxu0 0
    %219 = vmatpush1.bf16.msra.mxu0 0
    %220 = vmatprep.subr.bf16.mxu0 0
    %221 = vmatpush1.bf16.msra.mxu0 0
    %222 = vmatprep.subr.bf16.mxu0 0
    %223 = vmatpush1.bf16.msra.mxu0 0
    %224 = vmatprep.subr.bf16.mxu0 0
    %225 = vmatpush1.bf16.msra.mxu0 0
    %226 = vmatprep.subr.bf16.mxu0 0
    %227 = vmatpush1.bf16.msra.mxu0 0
    %228 = vmatprep.subr.bf16.mxu0 0
    %229 = vmatpush1.bf16.msra.mxu0 0
    %230 = vmatprep.subr.bf16.mxu0 0
    %231 = vmatpush1.bf16.msra.mxu0 0
    %232 = vmatprep.mubr.bf16.mxu0 0
    %233 = vmatmul.mubr.bf16.gmra.mrb[0].mxu0 %v130
    %v234 = vpop.f32.mrb[0].mxu0
    %v235 = vadd.f32 %v151, %v234
    %v236 = vpop.f32.mrb[0].mxu0
    %v237 = vpop.f32.mrb[0].mxu0
    %v238 = vpop.f32.mrb[0].mxu0
    %239 = vdwg.mxu0
    %v240 = vtanh.pop %v235
    %v241 = vpack.c.bf16 %v240, %v240
    %v242 = vld [vmem:[#allocation6] sm:$0xf]
    %v243 = vld [vmem:[#allocation6 + $0x4] sm:$0xf]
    %v244 = vld [vmem:[#allocation6 + $0x8] sm:$0xf]
    %v245 = vld [vmem:[#allocation6 + $0xc] sm:$0xf]
    %v246 = vld [vmem:[#allocation6 + $0x10] sm:$0xf]
    %v247 = vld [vmem:[#allocation6 + $0x14] sm:$0xf]
    %v248 = vld [vmem:[#allocation6 + $0x18] sm:$0xf]
    %v249 = vld [vmem:[#allocation6 + $0x1c] sm:$0xf]
    %v250 = vld [vmem:[#allocation6 + $0x20] sm:$0xf]
    %v251 = vld [vmem:[#allocation6 + $0x24] sm:$0xf]
    %v252 = vld [vmem:[#allocation6 + $0x28] sm:$0xf]
    %v253 = vld [vmem:[#allocation6 + $0x2c] sm:$0xf]
    %v254 = vld [vmem:[#allocation6 + $0x30] sm:$0xf]
    %v255 = vld [vmem:[#allocation6 + $0x34] sm:$0xf]
    %v256 = vld [vmem:[#allocation6 + $0x38] sm:$0xf]
    %v257 = vld [vmem:[#allocation6 + $0x3c] sm:$0xf]
    %v258 = vld [vmem:[%s4 + $0x2] sm:$0x1]
    %v259 = vlaneseq
    %v260 = vshrl.u32 %v259, 7
    %v261 = vsub.s32 0, %v260
    %v262 = vrot.slane %v258, %v261
    %v279 = vunpack.c.l.b16 %v242
    %v280 = vunpack.c.l.b16 %v243
    %v281 = vunpack.c.l.b16 %v244
    %v282 = vunpack.c.l.b16 %v245
    %v283 = vunpack.c.l.b16 %v246
    %v284 = vunpack.c.l.b16 %v247
    %v285 = vunpack.c.l.b16 %v248
    %v286 = vunpack.c.l.b16 %v249
    %v287 = vunpack.c.l.b16 %v250
    %v288 = vunpack.c.l.b16 %v251
    %v289 = vunpack.c.l.b16 %v252
    %v290 = vunpack.c.l.b16 %v253
    %v291 = vunpack.c.l.b16 %v254
    %v292 = vunpack.c.l.b16 %v255
    %v293 = vunpack.c.l.b16 %v256
    %v294 = vunpack.c.l.b16 %v257
    %v295 = vpack.c.b16 %v280, %v279
    %v296 = vpack.c.b16 %v282, %v281
    %v297 = vpack.c.b16 %v284, %v283
    %v298 = vpack.c.b16 %v286, %v285
    %v299 = vpack.c.b16 %v288, %v287
    %v300 = vpack.c.b16 %v290, %v289
    %v301 = vpack.c.b16 %v292, %v291
    %v302 = vpack.c.b16 %v294, %v293
    %311 = vmatprep.subr.bf16.mxu0 0
    %312 = vmatpush1.bf16.msra.mxu0 %v295
    %313 = vmatprep.subr.bf16.mxu0 0
    %314 = vmatpush1.bf16.msra.mxu0 %v296
    %315 = vmatprep.subr.bf16.mxu0 0
    %316 = vmatpush1.bf16.msra.mxu0 %v297
    %317 = vmatprep.subr.bf16.mxu0 0
    %318 = vmatpush1.bf16.msra.mxu0 %v298
    %319 = vmatprep.subr.bf16.mxu0 0
    %320 = vmatpush1.bf16.msra.mxu0 %v299
    %321 = vmatprep.subr.bf16.mxu0 0
    %322 = vmatpush1.bf16.msra.mxu0 %v300
    %323 = vmatprep.subr.bf16.mxu0 0
    %324 = vmatpush1.bf16.msra.mxu0 %v301
    %325 = vmatprep.subr.bf16.mxu0 0
    %326 = vmatpush1.bf16.msra.mxu0 %v302
    %327 = vmatprep.subr.bf16.mxu0 0
    %328 = vmatpush1.bf16.msra.mxu0 0
    %329 = vmatprep.subr.bf16.mxu0 0
    %330 = vmatpush1.bf16.msra.mxu0 0
    %331 = vmatprep.subr.bf16.mxu0 0
    %332 = vmatpush1.bf16.msra.mxu0 0
    %333 = vmatprep.subr.bf16.mxu0 0
    %334 = vmatpush1.bf16.msra.mxu0 0
    %335 = vmatprep.subr.bf16.mxu0 0
    %336 = vmatpush1.bf16.msra.mxu0 0
    %337 = vmatprep.subr.bf16.mxu0 0
    %338 = vmatpush1.bf16.msra.mxu0 0
    %339 = vmatprep.subr.bf16.mxu0 0
    %340 = vmatpush1.bf16.msra.mxu0 0
    %341 = vmatprep.subr.bf16.mxu0 0
    %342 = vmatpush1.bf16.msra.mxu0 0
    %343 = vmatprep.mubr.bf16.mxu0 0
    %344 = vmatmul.mubr.bf16.gmra.mrb[0].mxu0 %v241
    %v345 = vpop.f32.mrb[0].mxu0
    %v346 = vadd.f32 %v262, %v345
    %v347 = vpop.f32.mrb[0].mxu0
    %v348 = vpop.f32.mrb[0].mxu0
    %v349 = vpop.f32.mrb[0].mxu0
    %350 = vdwg.mxu0
    %v351 = vpack.c.bf16 %v346, %v346
    %352 = vst [vmem:[%s5] sm:$0xf] %v351
    // Predicated region
    $region34: #{mlp_apply_batched.1} parent=1 // pred_check
      _
    $region35: #{mlp_apply_batched.1} parent=1 // pred_check_branch
      %354 = sbr.rel (0) target = $region37
    $region36: #{mlp_apply_batched.1} parent=1 // pred_region
      _
    $region37: #{mlp_apply_batched.1} parent=1 // pred_fallthru
      _
    // Predicated region
    $region38: #{mlp_apply_batched.1} parent=1 // pred_check
      _
    $region39: #{mlp_apply_batched.1} parent=1 // pred_check_branch
      %356 = sbr.rel (0) target = $region41
    $region40: #{mlp_apply_batched.1} parent=1 // pred_region
      _
    $region41: #{mlp_apply_batched.1} parent=1 // pred_fallthru
      _
    %357 = vsyncpa [#allocation3], 1
    %358 = vsyncpa [#allocation5], 1

</llo_original>
